<compile_context>
chip_gen: v5e
topology: v5e:2x2
jax: 0.10.0
libtpu: 0.0.40
codegen_flags: <defaults>
</compile_context>

<pallas_src>
import numpy as np
import jax
import jax.numpy as jnp
from jax.experimental import pallas as pl
from jax.experimental.pallas import tpu as pltpu


def _round_down(x, m):
    return (x // m) * m


def upper_tri(inputs, diagonal_offset=2):
    """UpperTri forward: (B, C, S, S) -> (B, C, T)."""
    b, c, s, s2 = inputs.shape
    assert s == s2, "expected square spatial dims"
    d = int(diagonal_offset)
    assert 0 <= d < s, "diagonal_offset must lie in [0, seq_len)"

    # ---- static index bookkeeping (trace time, O(S)) ------------------------
    # Packed chunk i (i = 0 .. S-d-1) is X^T[:, i, i+d:S] (length S-d-i),
    # written at packed offset offsets[i].
    lengths = [s - d - i for i in range(s - d)]
    offsets = np.concatenate([[0], np.cumsum(lengths)]).astype(np.int64)
    t = int(offsets[-1])                      # == len(np.triu_indices(s, d)[0])

    bc = b * c
    itemsize = np.dtype(inputs.dtype).itemsize
    # Sublane packing of the 2nd-minor block dim (f32: 8, bf16: 16, int8: 32).
    sublane = {4: 8, 2: 16, 1: 32}.get(itemsize, 8)

    # ---- generation-aware VMEM budgets ---------------------------------------
    try:
        vmem_cap = int(pltpu.get_tpu_info().vmem_capacity_bytes)
    except Exception:                         # conservative fallback (v7x-sized)
        vmem_cap = 64 * 1024 * 1024
    if vmem_cap <= 64 * 1024 * 1024:          # v7x-class: 64 MiB per TensorCore
        block_budget = 8 * 1024 * 1024        # per (in + out) block (pre double-buffer)
        vmem_limit = 48 * 1024 * 1024
    else:                                     # v5e / v6e: 128 MiB physical
        block_budget = 14 * 1024 * 1024
        vmem_limit = 64 * 1024 * 1024

    # ---- (b,c)-row tiling ----------------------------------------------------
    bytes_per_row = (s * s + t) * itemsize
    fit = max(1, block_budget // bytes_per_row)
    if fit >= bc:
        tm = bc                               # full row dim: always a legal block
    elif bc < sublane:
        tm = bc
    else:
        tm = max(sublane, _round_down(min(fit, bc), sublane))
    # Keep >= 2 grid steps when there are enough rows so both v7x TensorCores
    # get work (row axis is "parallel"); harmless on single-TC v5e/v6e.
    if bc >= 2 * sublane:
        cap = max(sublane, _round_down(pl.cdiv(bc, 2), sublane))
        tm = min(tm, cap)
    grid = (pl.cdiv(bc, tm),)                 # partial trailing block is masked

    # BlockSpec double-buffers input and output blocks; bump the limit for the
    # large-S / tiny-bc corner where even `sublane` rows exceed the budget.
    # TODO(synk): for S >~ 1k f32 add a second "arbitrary" grid axis over
    # groups of triu chunks so resident blocks stay under physical VMEM.
    vmem_limit = max(vmem_limit, 2 * tm * bytes_per_row + (2 << 20))

    # Layout plumbing: present X^T row-major so the kernel only performs
    # contiguous lane-slice copies.  allow_input_fusion lets XLA fuse this
    # transpose/reshape into the pallas call instead of materializing it.
    #   xt_flat[r, i*S + j] == X[r, j, i]
    xt_flat = jnp.swapaxes(inputs, -1, -2).reshape(bc, s * s)

    def kernel(x_ref, o_ref):
        # x_ref: (tm, S*S) transposed-flattened inputs; o_ref: (tm, T) packed.
        # Pure copy gather: S-d static contiguous lane-slice copies.
        # TODO(synk): on v7x, group the short-tail chunks (ln <= 128) into one
        # corner copy if a bundle dump shows XLU/vst slots become the binder.
        for i in range(s - d):
            ln = s - d - i
            src = i * s + i + d
            dst = int(offsets[i])
            o_ref[:, dst:dst + ln] = x_ref[:, src:src + ln]

    out = pl.pallas_call(
        kernel,
        out_shape=jax.ShapeDtypeStruct((bc, t), inputs.dtype),
        grid_spec=pltpu.PrefetchScalarGridSpec(
            num_scalar_prefetch=0,
            grid=grid,
            in_specs=[pl.BlockSpec((tm, s * s), lambda r: (r, 0))],
            out_specs=pl.BlockSpec((tm, t), lambda r: (r, 0)),
        ),
        compiler_params=pltpu.CompilerParams(
            dimension_semantics=("parallel",),
            vmem_limit_bytes=int(vmem_limit),
            allow_input_fusion=[True],
        ),
        cost_estimate=pl.CostEstimate(
            flops=0,
            transcendentals=0,
            bytes_accessed=int(bc * (s * s + t) * itemsize),
        ),
    )(xt_flat)

    return out.reshape(b, c, t)


if __name__ == "__main__":
    # Small deterministic example consistent with the module: NCHW input.
    B, C, S = 2, 4, 16
    key = jax.random.PRNGKey(0)
    x = jax.random.normal(key, (B, C, S, S), dtype=jnp.float32)

    out = jax.block_until_ready(upper_tri(x, diagonal_offset=2))

    # Pure-numpy reference (mirrors the torch gather exactly).
    ti, tj = np.triu_indices(S, 2)
    flat_idx = ti + S * tj
    ref = np.asarray(x).reshape(B, C, S * S)[..., flat_idx]

    assert out.shape == (B, C, flat_idx.shape[0]), out.shape
    np.testing.assert_allclose(np.asarray(out), ref, rtol=0, atol=0)
    print("KERNEL_OK")
</pallas_src>

<mosaic_0001>
module attributes {stable_mosaic.version = 11 : i64} {
  func.func @kernel(%arg0: i32, %arg1: memref<8x256xf32, #tpu.memory_space<vmem>>, %arg2: memref<8x105xf32, #tpu.memory_space<vmem>>) attributes {dimension_semantics = [#tpu.dimension_semantics<parallel>], iteration_bounds = array<i64: 1>, scalar_prefetch = 0 : i64, scratch_operands = 0 : i64, tpu.core_type = #tpu.core_type<tc>, window_params = [{transform_indices = @transform_0, window_bounds = array<i64: 8, 256>}, {transform_indices = @transform_1, window_bounds = array<i64: 8, 105>}]} {
    %c0 = arith.constant 0 : index
    %c2 = arith.constant 2 : index
    %0 = vector.load %arg1[%c0, %c2] : memref<8x256xf32, #tpu.memory_space<vmem>>, vector<8x14xf32>
    %c0_0 = arith.constant 0 : index
    %c0_1 = arith.constant 0 : index
    %1 = vector.load %arg2[%c0_0, %c0_1] : memref<8x105xf32, #tpu.memory_space<vmem>>, vector<8x14xf32>
    tpu.vector_store %arg2[%c0_0, %c0_1], %0 {strides = array<i32>} : memref<8x105xf32, #tpu.memory_space<vmem>>, vector<8x14xf32>,
    %c0_2 = arith.constant 0 : index
    %c19 = arith.constant 19 : index
    %2 = vector.load %arg1[%c0_2, %c19] : memref<8x256xf32, #tpu.memory_space<vmem>>, vector<8x13xf32>
    %c0_3 = arith.constant 0 : index
    %c14 = arith.constant 14 : index
    %3 = vector.load %arg2[%c0_3, %c14] : memref<8x105xf32, #tpu.memory_space<vmem>>, vector<8x13xf32>
    tpu.vector_store %arg2[%c0_3, %c14], %2 {strides = array<i32>} : memref<8x105xf32, #tpu.memory_space<vmem>>, vector<8x13xf32>,
    %c0_4 = arith.constant 0 : index
    %c36 = arith.constant 36 : index
    %4 = vector.load %arg1[%c0_4, %c36] : memref<8x256xf32, #tpu.memory_space<vmem>>, vector<8x12xf32>
    %c0_5 = arith.constant 0 : index
    %c27 = arith.constant 27 : index
    %5 = vector.load %arg2[%c0_5, %c27] : memref<8x105xf32, #tpu.memory_space<vmem>>, vector<8x12xf32>
    tpu.vector_store %arg2[%c0_5, %c27], %4 {strides = array<i32>} : memref<8x105xf32, #tpu.memory_space<vmem>>, vector<8x12xf32>,
    %c0_6 = arith.constant 0 : index
    %c53 = arith.constant 53 : index
    %6 = vector.load %arg1[%c0_6, %c53] : memref<8x256xf32, #tpu.memory_space<vmem>>, vector<8x11xf32>
    %c0_7 = arith.constant 0 : index
    %c39 = arith.constant 39 : index
    %7 = vector.load %arg2[%c0_7, %c39] : memref<8x105xf32, #tpu.memory_space<vmem>>, vector<8x11xf32>
    tpu.vector_store %arg2[%c0_7, %c39], %6 {strides = array<i32>} : memref<8x105xf32, #tpu.memory_space<vmem>>, vector<8x11xf32>,
    %c0_8 = arith.constant 0 : index
    %c70 = arith.constant 70 : index
    %8 = vector.load %arg1[%c0_8, %c70] : memref<8x256xf32, #tpu.memory_space<vmem>>, vector<8x10xf32>
    %c0_9 = arith.constant 0 : index
    %c50 = arith.constant 50 : index
    %9 = vector.load %arg2[%c0_9, %c50] : memref<8x105xf32, #tpu.memory_space<vmem>>, vector<8x10xf32>
    tpu.vector_store %arg2[%c0_9, %c50], %8 {strides = array<i32>} : memref<8x105xf32, #tpu.memory_space<vmem>>, vector<8x10xf32>,
    %c0_10 = arith.constant 0 : index
    %c87 = arith.constant 87 : index
    %10 = vector.load %arg1[%c0_10, %c87] : memref<8x256xf32, #tpu.memory_space<vmem>>, vector<8x9xf32>
    %c0_11 = arith.constant 0 : index
    %c60 = arith.constant 60 : index
    %11 = vector.load %arg2[%c0_11, %c60] : memref<8x105xf32, #tpu.memory_space<vmem>>, vector<8x9xf32>
    tpu.vector_store %arg2[%c0_11, %c60], %10 {strides = array<i32>} : memref<8x105xf32, #tpu.memory_space<vmem>>, vector<8x9xf32>,
    %c0_12 = arith.constant 0 : index
    %c104 = arith.constant 104 : index
    %12 = vector.load %arg1[%c0_12, %c104] : memref<8x256xf32, #tpu.memory_space<vmem>>, vector<8x8xf32>
    %c0_13 = arith.constant 0 : index
    %c69 = arith.constant 69 : index
    %13 = vector.load %arg2[%c0_13, %c69] : memref<8x105xf32, #tpu.memory_space<vmem>>, vector<8x8xf32>
    tpu.vector_store %arg2[%c0_13, %c69], %12 {strides = array<i32>} : memref<8x105xf32, #tpu.memory_space<vmem>>, vector<8x8xf32>,
    %c0_14 = arith.constant 0 : index
    %c121 = arith.constant 121 : index
    %14 = vector.load %arg1[%c0_14, %c121] : memref<8x256xf32, #tpu.memory_space<vmem>>, vector<8x7xf32>
    %c0_15 = arith.constant 0 : index
    %c77 = arith.constant 77 : index
    %15 = vector.load %arg2[%c0_15, %c77] : memref<8x105xf32, #tpu.memory_space<vmem>>, vector<8x7xf32>
    tpu.vector_store %arg2[%c0_15, %c77], %14 {strides = array<i32>} : memref<8x105xf32, #tpu.memory_space<vmem>>, vector<8x7xf32>,
    %c0_16 = arith.constant 0 : index
    %c138 = arith.constant 138 : index
    %16 = vector.load %arg1[%c0_16, %c138] : memref<8x256xf32, #tpu.memory_space<vmem>>, vector<8x6xf32>
    %c0_17 = arith.constant 0 : index
    %c84 = arith.constant 84 : index
    %17 = vector.load %arg2[%c0_17, %c84] : memref<8x105xf32, #tpu.memory_space<vmem>>, vector<8x6xf32>
    tpu.vector_store %arg2[%c0_17, %c84], %16 {strides = array<i32>} : memref<8x105xf32, #tpu.memory_space<vmem>>, vector<8x6xf32>,
    %c0_18 = arith.constant 0 : index
    %c155 = arith.constant 155 : index
    %18 = vector.load %arg1[%c0_18, %c155] : memref<8x256xf32, #tpu.memory_space<vmem>>, vector<8x5xf32>
    %c0_19 = arith.constant 0 : index
    %c90 = arith.constant 90 : index
    %19 = vector.load %arg2[%c0_19, %c90] : memref<8x105xf32, #tpu.memory_space<vmem>>, vector<8x5xf32>
    tpu.vector_store %arg2[%c0_19, %c90], %18 {strides = array<i32>} : memref<8x105xf32, #tpu.memory_space<vmem>>, vector<8x5xf32>,
    %c0_20 = arith.constant 0 : index
    %c172 = arith.constant 172 : index
    %20 = vector.load %arg1[%c0_20, %c172] : memref<8x256xf32, #tpu.memory_space<vmem>>, vector<8x4xf32>
    %c0_21 = arith.constant 0 : index
    %c95 = arith.constant 95 : index
    %21 = vector.load %arg2[%c0_21, %c95] : memref<8x105xf32, #tpu.memory_space<vmem>>, vector<8x4xf32>
    tpu.vector_store %arg2[%c0_21, %c95], %20 {strides = array<i32>} : memref<8x105xf32, #tpu.memory_space<vmem>>, vector<8x4xf32>,
    %c0_22 = arith.constant 0 : index
    %c189 = arith.constant 189 : index
    %22 = vector.load %arg1[%c0_22, %c189] : memref<8x256xf32, #tpu.memory_space<vmem>>, vector<8x3xf32>
    %c0_23 = arith.constant 0 : index
    %c99 = arith.constant 99 : index
    %23 = vector.load %arg2[%c0_23, %c99] : memref<8x105xf32, #tpu.memory_space<vmem>>, vector<8x3xf32>
    tpu.vector_store %arg2[%c0_23, %c99], %22 {strides = array<i32>} : memref<8x105xf32, #tpu.memory_space<vmem>>, vector<8x3xf32>,
    %c0_24 = arith.constant 0 : index
    %c206 = arith.constant 206 : index
    %24 = vector.load %arg1[%c0_24, %c206] : memref<8x256xf32, #tpu.memory_space<vmem>>, vector<8x2xf32>
    %c0_25 = arith.constant 0 : index
    %c102 = arith.constant 102 : index
    %25 = vector.load %arg2[%c0_25, %c102] : memref<8x105xf32, #tpu.memory_space<vmem>>, vector<8x2xf32>
    tpu.vector_store %arg2[%c0_25, %c102], %24 {strides = array<i32>} : memref<8x105xf32, #tpu.memory_space<vmem>>, vector<8x2xf32>,
    %c0_26 = arith.constant 0 : index
    %c223 = arith.constant 223 : index
    %26 = vector.load %arg1[%c0_26, %c223] : memref<8x256xf32, #tpu.memory_space<vmem>>, vector<8x1xf32>
    %c0_27 = arith.constant 0 : index
    %c104_28 = arith.constant 104 : index
    %27 = vector.load %arg2[%c0_27, %c104_28] : memref<8x105xf32, #tpu.memory_space<vmem>>, vector<8x1xf32>
    tpu.vector_store %arg2[%c0_27, %c104_28], %26 {strides = array<i32>} : memref<8x105xf32, #tpu.memory_space<vmem>>, vector<8x1xf32>,
    return
  }
  func.func @transform_0(%arg0: i32) -> (i32, i32) {
    %c0_i32 = arith.constant 0 : i32
    %c0_i32_0 = arith.constant 0 : i32
    return %arg0, %c0_i32 : i32, i32
  }
  func.func @transform_1(%arg0: i32) -> (i32, i32) {
    %c0_i32 = arith.constant 0 : i32
    %c0_i32_0 = arith.constant 0 : i32
    return %arg0, %c0_i32 : i32, i32
  }
}

</mosaic_0001>

<llo_original>
// kernel: tpu_custom_call.1
$region0: #{tpu_custom_call.1}
  #allocation0 [shape = 'u32[]', space=smem, size = 0x4, offset = 0x4, fixed_abs, tag = 'smem constant byte address 0x4 - core index']
  #allocation1 [shape = 'u32[72,128]{1,0:T(1,128)}', space=vmem, size = 0x9000, scoped, tag = 'internal scratch']
  %s0 = inlined_call_operand.hbm [shape: f32[8,256], index: 0, kind: input, shape index: {}]
  %s1 = inlined_call_operand.hbm [shape: f32[8,105], index: 1, kind: output, shape index: {}]
  %s2 = sld [smem:[#allocation0]]
  $region18: #{tpu_custom_call.1} parent=0
    _
  %s4 = ssub.s32 1, %s2
  %s5 = scalar_select 0, %s4, %s2
  $region1: #{tpu_custom_call.1} parent=0
    #allocation2 [shape = 'u8[8192]{0}', space=vmem, size = 0x2000, scoped, tag = 'input window, operand 0, single buffered']
    #allocation3 [shape = 's32[1]{0}', space=sflag, size = 0x4, scoped, tag = 'scoped memory for tpu_custom_call.1']
    #allocation4 [shape = 's32[1]{0}', space=sflag, size = 0x4, scoped, tag = 'scoped memory for tpu_custom_call.1']
    #allocation5 [shape = 'u8[4096]{0}', space=vmem, size = 0x1000, scoped, tag = 'output window, operand 0, single buffered']
    %6 = vsyncpa [#allocation3], 0
    %7 = vsyncpa [#allocation4], 0
    // Predicated region
    $region2: #{tpu_custom_call.1} parent=1 // pred_check
      _
    $region3: #{tpu_custom_call.1} parent=1 // pred_check_branch
      %9 = sbr.rel (0) target = $region5
    $region4: #{tpu_custom_call.1} parent=1 // pred_region
      %11 = vsyncadd [#allocation3], 0
      %s13 = sshll.u32 %s0, 4
      %s14 = int_to_ptr.hbm [resolvable:$true] %s13
      %s15 = sshll.u32 [#allocation2], 4
      %s16 = int_to_ptr.vmem [resolvable:$true] %s15
      %18 = dma.hbm_to_vmem [thread:$0]  %s14, 256, %s16, [#allocation3]
    $region5: #{tpu_custom_call.1} parent=1 // pred_fallthru
      _
    // Predicated region
    $region6: #{tpu_custom_call.1} parent=1 // pred_check
      _
    $region7: #{tpu_custom_call.1} parent=1 // pred_check_branch
      %20 = sbr.rel (0) target = $region9
    $region8: #{tpu_custom_call.1} parent=1 // pred_region
      %22 = dma.done [#allocation3], 256
    $region9: #{tpu_custom_call.1} parent=1 // pred_fallthru
      _
    %v23 = vld [vmem:[#allocation2] sm:$0xff]
    %25 = vrot.lane.b32.xlu0 %v23, 126
    %v26 = vpop.permute.xlu0 %25
    %vm28 = vcmask 113664
    %29 = vst.msk [vmem:[#allocation5] sm:$0xff] %vm28, %v26
    %v30 = vld [vmem:[#allocation2] sm:$0xff]
    %32 = vrot.lane.b32.xlu0 %v30, 123
    %v33 = vpop.permute.xlu0 %32
    %vm35 = vcmask 220272
    %36 = vst.msk [vmem:[#allocation5] sm:$0xff] %vm35, %v33
    %v37 = vld [vmem:[#allocation2] sm:$0xff]
    %39 = vrot.lane.b32.xlu0 %v37, 119
    %v40 = vpop.permute.xlu0 %39
    %vm42 = vcmask 318680
    %43 = vst.msk [vmem:[#allocation5] sm:$0xff] %vm42, %v40
    %v44 = vld [vmem:[#allocation2] sm:$0xff]
    %46 = vrot.lane.b32.xlu0 %v44, 114
    %v47 = vpop.permute.xlu0 %46
    %vm49 = vcmask 408888
    %50 = vst.msk [vmem:[#allocation5] sm:$0xff] %vm49, %v47
    %v51 = vld [vmem:[#allocation2] sm:$0xff]
    %53 = vrot.lane.b32.xlu0 %v51, 108
    %v54 = vpop.permute.xlu0 %53
    %vm56 = vcmask 490896
    %57 = vst.msk [vmem:[#allocation5] sm:$0xff] %vm56, %v54
    %v58 = vld [vmem:[#allocation2] sm:$0xff]
    %60 = vrot.lane.b32.xlu0 %v58, 101
    %v61 = vpop.permute.xlu0 %60
    %vm63 = vcmask 564704
    %64 = vst.msk [vmem:[#allocation5] sm:$0xff] %vm63, %v61
    %v65 = vld [vmem:[#allocation2] sm:$0xff]
    %67 = vrot.lane.b32.xlu0 %v65, 93
    %v68 = vpop.permute.xlu0 %67
    %vm70 = vcmask 630312
    %71 = vst.msk [vmem:[#allocation5] sm:$0xff] %vm70, %v68
    %v72 = vld [vmem:[#allocation2] sm:$0xff]
    %74 = vrot.lane.b32.xlu0 %v72, 84
    %v75 = vpop.permute.xlu0 %74
    %vm77 = vcmask 687720
    %78 = vst.msk [vmem:[#allocation5] sm:$0xff] %vm77, %v75
    %v79 = vld [vmem:[#allocation2 + $0x8] sm:$0xff]
    %81 = vrot.lane.b32.xlu0 %v79, 74
    %v82 = vpop.permute.xlu0 %81
    %vm84 = vcmask 736928
    %85 = vst.msk [vmem:[#allocation5] sm:$0xff] %vm84, %v82
    %v86 = vld [vmem:[#allocation2 + $0x8] sm:$0xff]
    %88 = vrot.lane.b32.xlu0 %v86, 63
    %v89 = vpop.permute.xlu0 %88
    %vm91 = vcmask 777936
    %92 = vst.msk [vmem:[#allocation5] sm:$0xff] %vm91, %v89
    %v93 = vld [vmem:[#allocation2 + $0x8] sm:$0xff]
    %95 = vrot.lane.b32.xlu0 %v93, 51
    %v96 = vpop.permute.xlu0 %95
    %vm98 = vcmask 810744
    %99 = vst.msk [vmem:[#allocation5] sm:$0xff] %vm98, %v96
    %v100 = vld [vmem:[#allocation2 + $0x8] sm:$0xff]
    %102 = vrot.lane.b32.xlu0 %v100, 38
    %v103 = vpop.permute.xlu0 %102
    %vm105 = vcmask 835352
    %106 = vst.msk [vmem:[#allocation5] sm:$0xff] %vm105, %v103
    %v107 = vld [vmem:[#allocation2 + $0x8] sm:$0xff]
    %109 = vrot.lane.b32.xlu0 %v107, 24
    %v110 = vpop.permute.xlu0 %109
    %vm112 = vcmask 851760
    %113 = vst.msk [vmem:[#allocation5] sm:$0xff] %vm112, %v110
    %v114 = vld [vmem:[#allocation2 + $0x8] sm:$0xff]
    %116 = vrot.lane.b32.xlu0 %v114, 9
    %v117 = vpop.permute.xlu0 %116
    %vm119 = vcmask 859968
    %120 = vst.msk [vmem:[#allocation5] sm:$0xff] %vm119, %v117
    // Predicated region
    $region10: #{tpu_custom_call.1} parent=1 // pred_check
      _
    $region11: #{tpu_custom_call.1} parent=1 // pred_check_branch
      %122 = sbr.rel (0) target = $region13
    $region12: #{tpu_custom_call.1} parent=1 // pred_region
      %124 = vsyncadd [#allocation4], 0
      %s126 = sshll.u32 [#allocation5], 4
      %s127 = int_to_ptr.vmem [resolvable:$true] %s126
      %s128 = sshll.u32 %s1, 4
      %s129 = int_to_ptr.hbm [resolvable:$true] %s128
      %131 = dma.vmem_to_hbm [thread:$0]  %s127, 128, %s129, [#allocation4]
    $region13: #{tpu_custom_call.1} parent=1 // pred_fallthru
      _
    // Predicated region
    $region14: #{tpu_custom_call.1} parent=1 // pred_check
      _
    $region15: #{tpu_custom_call.1} parent=1 // pred_check_branch
      %133 = sbr.rel (0) target = $region17
    $region16: #{tpu_custom_call.1} parent=1 // pred_region
      %135 = dma.done [#allocation4], 128
    $region17: #{tpu_custom_call.1} parent=1 // pred_fallthru
      _
    %136 = vsyncpa [#allocation3], 1
    %137 = vsyncpa [#allocation4], 1

</llo_original>
